<compile_context>
chip_gen: v7x
topology: tpu7x:2x2x1
jax: 0.10.0
libtpu: 0.0.40
codegen_flags: <defaults>
</compile_context>

<pallas_src>
import jax
import jax.numpy as jnp
from jax.experimental import pallas as pl
from jax.experimental.pallas import tpu as pltpu

# ---- small example hyper-parameters consistent with the module ----
BATCH = 2
IN_CHANS = 1
ENZ_LEN = 16          # enz_shape[0] : number of atoms (incl. padding)
ENZ_COLS = 4          # enz_shape[1] : x,y,z + atomic encoding
PATCH_LEN = 4         # atoms per patch
N_PATCHES = ENZ_LEN // PATCH_LEN
EMBED_DIM = 128       # lane-dense (multiple of 128); default in the module is 768
K_DIM = IN_CHANS * PATCH_LEN * ENZ_COLS   # flattened patch length


# ---------------- fused patch-embed kernel ----------------
def patch_embed_kernel(xp_ref, w_ref, b_ref, o_ref):
    # xp_ref : (rows, K)   flattened patches (rows = B*P or a row tile)
    # w_ref  : (K, E)      flattened conv weight, transposed
    # b_ref  : (1, E)      conv bias (f32)
    # o_ref  : (rows, E)   embedded patches (lane-dense)
    acc = jnp.dot(xp_ref[...], w_ref[...], preferred_element_type=jnp.float32)
    o_ref[...] = (acc + b_ref[...]).astype(o_ref.dtype)


# ---------------- wrapper ----------------
def run_patch_embed(x, w_conv, b_conv, patch_length, *, row_tile=512,
                    mxu_dtype=None):
    """x: (B, C, H, W); w_conv: (E, C, patch_length, W); b_conv: (E,).

    mxu_dtype: optionally jnp.bfloat16 to feed the MXU bf16 operands on
    v6e/v7x (accumulation + bias add stay f32).  Leave None for f32.
    """
    B, C, H, W = x.shape
    E = w_conv.shape[0]
    P = H // patch_length
    K = C * patch_length * W
    rows = B * P

    # Patch extraction (trace-time layout plumbing, matches the (c,i,j)
    # flattening order of the Conv2d weight).
    # TODO(synk): for in_chans > 1 this transpose materializes a copy of x in
    # HBM before the kernel; move extraction into the kernel via a BlockSpec
    # on x if that ever matters.
    xp = (
        x.reshape(B, C, P, patch_length, W)
        .transpose(0, 2, 1, 3, 4)
        .reshape(rows, K)
    )
    wt = w_conv.reshape(E, K).T            # (K, E)
    bias = b_conv.reshape(1, E).astype(jnp.float32)

    if mxu_dtype is not None:
        xp = xp.astype(mxu_dtype)
        wt = wt.astype(mxu_dtype)

    if rows <= row_tile:
        # Small problem: single-shot call, no grid, no software pipeline, no
        # double-buffering.  Everything lives in VMEM as full arrays.
        out = pl.pallas_call(
            patch_embed_kernel,
            out_shape=jax.ShapeDtypeStruct((rows, E), jnp.float32),
            in_specs=[
                pl.BlockSpec(memory_space=pltpu.MemorySpace.VMEM),
                pl.BlockSpec(memory_space=pltpu.MemorySpace.VMEM),
                pl.BlockSpec(memory_space=pltpu.MemorySpace.VMEM),
            ],
            out_specs=pl.BlockSpec(memory_space=pltpu.MemorySpace.VMEM),
        )(xp, wt, bias)
    else:
        # Scaled problem: tile the folded B*P row axis.  Weight/bias block
        # indices are constant across steps -> they stay resident in VMEM.
        n_steps = pl.cdiv(rows, row_tile)
        rows_p = n_steps * row_tile
        if rows_p != rows:
            xp = jnp.pad(xp, ((0, rows_p - rows), (0, 0)))
        out = pl.pallas_call(
            patch_embed_kernel,
            out_shape=jax.ShapeDtypeStruct((rows_p, E), jnp.float32),
            grid=(n_steps,),
            in_specs=[
                pl.BlockSpec((row_tile, K), lambda i: (i, 0)),
                pl.BlockSpec((K, E), lambda i: (0, 0)),   # resident across steps
                pl.BlockSpec((1, E), lambda i: (0, 0)),   # resident across steps
            ],
            out_specs=pl.BlockSpec((row_tile, E), lambda i: (i, 0)),
            compiler_params=pltpu.CompilerParams(
                # Independent row tiles: shard across v7x's two TensorCores.
                dimension_semantics=("parallel",),
            ),
        )(xp, wt, bias)
        out = out[:rows]

    return out.reshape(B, P, E)


# ---------------- pure-JAX reference (real conv, for verification) ----------------
def reference(x, w_conv, b_conv, patch_length):
    out = jax.lax.conv_general_dilated(
        x, w_conv,
        window_strides=(patch_length, patch_length),
        padding="VALID",
        dimension_numbers=("NCHW", "OIHW", "NCHW"),
    )
    out = out + b_conv.reshape(1, -1, 1, 1)          # (B, E, P, 1)
    B, E, P, _ = out.shape
    out = out.reshape(B, E, P)                        # flatten(2)
    return out.transpose(0, 2, 1)                     # transpose(1, 2) -> (B, P, E)


if __name__ == "__main__":
    key = jax.random.PRNGKey(0)
    kx, kw, kb, kx2 = jax.random.split(key, 4)

    # ---- small test (no-grid fast path) ----
    x = jax.random.normal(kx, (BATCH, IN_CHANS, ENZ_LEN, ENZ_COLS), dtype=jnp.float32)

    # Conv2d-style init (uniform in +/- 1/sqrt(fan_in)), deterministic.
    bound = 1.0 / (K_DIM ** 0.5)
    w_conv = jax.random.uniform(
        kw, (EMBED_DIM, IN_CHANS, PATCH_LEN, ENZ_COLS), jnp.float32, -bound, bound
    )
    b_conv = jax.random.uniform(kb, (EMBED_DIM,), jnp.float32, -bound, bound)

    out = run_patch_embed(x, w_conv, b_conv, PATCH_LEN)
    out = jax.block_until_ready(out)

    ref = reference(x, w_conv, b_conv, PATCH_LEN)
    assert out.shape == (BATCH, N_PATCHES, EMBED_DIM), out.shape
    assert jnp.allclose(out, ref, atol=1e-4, rtol=1e-4), (
        f"max abs err {float(jnp.max(jnp.abs(out - ref)))}"
    )

    # ---- slightly larger test exercising the row-tiled "parallel" grid path ----
    LONG_LEN = 1024                                   # 4 * 256 patches = 1024 rows > row_tile
    x2 = jax.random.normal(kx2, (4, IN_CHANS, LONG_LEN, ENZ_COLS), dtype=jnp.float32)
    out2 = run_patch_embed(x2, w_conv, b_conv, PATCH_LEN, row_tile=512)
    out2 = jax.block_until_ready(out2)
    ref2 = reference(x2, w_conv, b_conv, PATCH_LEN)
    assert out2.shape == ref2.shape, (out2.shape, ref2.shape)
    assert jnp.allclose(out2, ref2, atol=1e-4, rtol=1e-4), (
        f"max abs err {float(jnp.max(jnp.abs(out2 - ref2)))}"
    )

    print("KERNEL_OK")
</pallas_src>

<mosaic_0001>
module attributes {stable_mosaic.version = 11 : i64} {
  func.func @patch_embed_kernel(%arg0: memref<8x16xf32, #tpu.memory_space<vmem>>, %arg1: memref<16x128xf32, #tpu.memory_space<vmem>>, %arg2: memref<1x128xf32, #tpu.memory_space<vmem>>, %arg3: memref<8x128xf32, #tpu.memory_space<vmem>>) attributes {dimension_semantics = [], scalar_prefetch = 0 : i64, scratch_operands = 0 : i64, tpu.core_type = #tpu.core_type<tc>} {
    %c0 = arith.constant 0 : index
    %c0_0 = arith.constant 0 : index
    %0 = vector.load %arg0[%c0, %c0_0] : memref<8x16xf32, #tpu.memory_space<vmem>>, vector<8x16xf32>
    %c0_1 = arith.constant 0 : index
    %c0_2 = arith.constant 0 : index
    %1 = vector.load %arg1[%c0_1, %c0_2] : memref<16x128xf32, #tpu.memory_space<vmem>>, vector<16x128xf32>
    %cst = arith.constant dense<0.000000e+00> : vector<8x128xf32>
    %2 = tpu.matmul %0, %1, %cst {dimension_numbers = #tpu.dot_dimension_numbers<[1], [0], [0], [1], [0, 0, 1, 1], [], []>} : vector<8x16xf32>, vector<16x128xf32>, vector<8x128xf32> -> vector<8x128xf32>
    %c0_3 = arith.constant 0 : index
    %c0_4 = arith.constant 0 : index
    %3 = vector.load %arg2[%c0_3, %c0_4] : memref<1x128xf32, #tpu.memory_space<vmem>>, vector<1x128xf32>
    %4 = vector.broadcast %3 : vector<1x128xf32> to vector<8x128xf32>
    %5 = arith.addf %2, %4 : vector<8x128xf32>
    %c0_5 = arith.constant 0 : index
    %c0_6 = arith.constant 0 : index
    %6 = vector.load %arg3[%c0_5, %c0_6] : memref<8x128xf32, #tpu.memory_space<vmem>>, vector<8x128xf32>
    tpu.vector_store %arg3[%c0_5, %c0_6], %5 {strides = array<i32>} : memref<8x128xf32, #tpu.memory_space<vmem>>, vector<8x128xf32>,
    return
  }
}

</mosaic_0001>

<llo_original>
// kernel: tpu_custom_call.1
$region0: #{tpu_custom_call.1}
  #allocation0 [shape = 'u32[]', space=smem, size = 0x4, offset = 0x4, fixed_abs, tag = 'smem constant byte address 0x4 - core index']
  #allocation1 [shape = 'u32[144,128]{1,0:T(1,128)}', space=vmem, size = 0x12000, scoped, tag = 'internal scratch']
  %s0 = inlined_call_operand.hbm [shape: f32[8,16], index: 0, kind: input, shape index: {}]
  %s1 = inlined_call_operand.hbm [shape: f32[16,128], index: 1, kind: input, shape index: {}]
  %s2 = inlined_call_operand.vmem [shape: f32[1,128], index: 2, kind: input, shape index: {}]
  %s3 = inlined_call_operand.hbm [shape: f32[8,128], index: 3, kind: output, shape index: {}]
  %s4 = sld [smem:[#allocation0]]
  $region30: #{tpu_custom_call.1} parent=0
    _
  %s6 = ssub.s32 1, %s4
  %s7 = scalar_select 0, %s6, %s4
  $region1: #{tpu_custom_call.1} parent=0
    #allocation2 [shape = 'u8[4096]{0}', space=vmem, size = 0x1000, scoped, tag = 'input window, operand 0, single buffered']
    #allocation3 [shape = 's32[1]{0}', space=sflag, size = 0x4, scoped, tag = 'scoped memory for tpu_custom_call.1']
    #allocation4 [shape = 's32[1]{0}', space=sflag, size = 0x4, scoped, tag = 'scoped memory for tpu_custom_call.1']
    #allocation5 [shape = 'u8[8192]{0}', space=vmem, size = 0x2000, scoped, tag = 'input window, operand 1, single buffered']
    #allocation6 [shape = 's32[1]{0}', space=sflag, size = 0x4, scoped, tag = 'scoped memory for tpu_custom_call.1']
    #allocation7 [shape = 'u8[4096]{0}', space=vmem, size = 0x1000, scoped, tag = 'output window, operand 0, single buffered']
    %8 = vsyncpa [#allocation3], 0
    %9 = vsyncpa [#allocation6], 0
    %10 = vsyncpa [#allocation4], 0
    // Predicated region
    $region2: #{tpu_custom_call.1} parent=1 // pred_check
      _
    $region3: #{tpu_custom_call.1} parent=1 // pred_check_branch
      %12 = sbr.rel (0) target = $region5
    $region4: #{tpu_custom_call.1} parent=1 // pred_region
      %s14 = ssub.s32 128, 128
      %15 = vsyncadd [#allocation3], %s14
      %s17 = sshll.u32 [#allocation2], 4
      %s18 = int_to_ptr.vmem [resolvable:$true] %s17
      %20 = dma.hbm_to_vmem [thread:$0]  %s0, 128, %s18, [#allocation3]
    $region5: #{tpu_custom_call.1} parent=1 // pred_fallthru
      _
    // Predicated region
    $region6: #{tpu_custom_call.1} parent=1 // pred_check
      _
    $region7: #{tpu_custom_call.1} parent=1 // pred_check_branch
      %22 = sbr.rel (0) target = $region9
    $region8: #{tpu_custom_call.1} parent=1 // pred_region
      %s24 = ssub.s32 256, 256
      %25 = vsyncadd [#allocation6], %s24
      %s26 = sshll.u32 [#allocation5], 4
      %s27 = int_to_ptr.vmem [resolvable:$true] %s26
      %32 = dma.hbm_to_vmem [thread:$0]  %s1, 256, %s27, [#allocation6], 128, 128, 8
    $region9: #{tpu_custom_call.1} parent=1 // pred_fallthru
      _
    // Predicated region
    $region10: #{tpu_custom_call.1} parent=1 // pred_check
      _
    $region11: #{tpu_custom_call.1} parent=1 // pred_check_branch
      %34 = sbr.rel (0) target = $region13
    $region12: #{tpu_custom_call.1} parent=1 // pred_region
      _
    $region13: #{tpu_custom_call.1} parent=1 // pred_fallthru
      _
    // Predicated region
    $region14: #{tpu_custom_call.1} parent=1 // pred_check
      _
    $region15: #{tpu_custom_call.1} parent=1 // pred_check_branch
      %36 = sbr.rel (0) target = $region17
    $region16: #{tpu_custom_call.1} parent=1 // pred_region
      %37 = dma.done [#allocation3], 128
    $region17: #{tpu_custom_call.1} parent=1 // pred_fallthru
      _
    // Predicated region
    $region18: #{tpu_custom_call.1} parent=1 // pred_check
      _
    $region19: #{tpu_custom_call.1} parent=1 // pred_check_branch
      %39 = sbr.rel (0) target = $region21
    $region20: #{tpu_custom_call.1} parent=1 // pred_region
      %40 = dma.done [#allocation6], 256
    $region21: #{tpu_custom_call.1} parent=1 // pred_fallthru
      _
    %v41 = vld [vmem:[#allocation2] sm:$0xff]
    %v42 = vld [vmem:[#allocation5] sm:$0xff]
    %v43 = vld [vmem:[#allocation5 + $0x8] sm:$0xff]
    %v44 = vld [vmem:[%s2] sm:$0x1]
    %v46 = vlaneseq
    %v47 = vshrl.u32 %v46, 7
    %v48 = vsub.s32 0, %v47
    %v49 = vrot.slane %v44, %v48
    %vm51 = vcmask 130048
    %v53 = vsel %vm51, %v41, 0
    %55 = vmatprep.subr.mxu0 0.0
    %56 = vmatpush1.msra.mxu0 %v42
    %57 = vmatprep.subr.mxu0 0.0
    %58 = vmatpush1.msra.mxu0 %v43
    %59 = vmatprep.subr.mxu0 0.0
    %60 = vmatpush1.msra.mxu0 0.0
    %61 = vmatprep.subr.mxu0 0.0
    %62 = vmatpush1.msra.mxu0 0.0
    %63 = vmatprep.subr.mxu0 0.0
    %64 = vmatpush1.msra.mxu0 0.0
    %65 = vmatprep.subr.mxu0 0.0
    %66 = vmatpush1.msra.mxu0 0.0
    %67 = vmatprep.subr.mxu0 0.0
    %68 = vmatpush1.msra.mxu0 0.0
    %69 = vmatprep.subr.mxu0 0.0
    %70 = vmatpush1.msra.mxu0 0.0
    %71 = vmatprep.subr.mxu0 0.0
    %72 = vmatpush1.msra.mxu0 0.0
    %73 = vmatprep.subr.mxu0 0.0
    %74 = vmatpush1.msra.mxu0 0.0
    %75 = vmatprep.subr.mxu0 0.0
    %76 = vmatpush1.msra.mxu0 0.0
    %77 = vmatprep.subr.mxu0 0.0
    %78 = vmatpush1.msra.mxu0 0.0
    %79 = vmatprep.subr.mxu0 0.0
    %80 = vmatpush1.msra.mxu0 0.0
    %81 = vmatprep.subr.mxu0 0.0
    %82 = vmatpush1.msra.mxu0 0.0
    %83 = vmatprep.subr.mxu0 0.0
    %84 = vmatpush1.msra.mxu0 0.0
    %85 = vmatprep.subr.mxu0 0.0
    %86 = vmatpush1.msra.mxu0 0.0
    %87 = vmatprep.subr.mxu0 0.0
    %88 = vmatpush1.msra.mxu0 0.0
    %89 = vmatprep.subr.mxu0 0.0
    %90 = vmatpush1.msra.mxu0 0.0
    %91 = vmatprep.subr.mxu0 0.0
    %92 = vmatpush1.msra.mxu0 0.0
    %93 = vmatprep.subr.mxu0 0.0
    %94 = vmatpush1.msra.mxu0 0.0
    %95 = vmatprep.subr.mxu0 0.0
    %96 = vmatpush1.msra.mxu0 0.0
    %97 = vmatprep.subr.mxu0 0.0
    %98 = vmatpush1.msra.mxu0 0.0
    %99 = vmatprep.subr.mxu0 0.0
    %100 = vmatpush1.msra.mxu0 0.0
    %101 = vmatprep.subr.mxu0 0.0
    %102 = vmatpush1.msra.mxu0 0.0
    %103 = vmatprep.subr.mxu0 0.0
    %104 = vmatpush1.msra.mxu0 0.0
    %105 = vmatprep.subr.mxu0 0.0
    %106 = vmatpush1.msra.mxu0 0.0
    %107 = vmatprep.subr.mxu0 0.0
    %108 = vmatpush1.msra.mxu0 0.0
    %109 = vmatprep.subr.mxu0 0.0
    %110 = vmatpush1.msra.mxu0 0.0
    %111 = vmatprep.subr.mxu0 0.0
    %112 = vmatpush1.msra.mxu0 0.0
    %113 = vmatprep.subr.mxu0 0.0
    %114 = vmatpush1.msra.mxu0 0.0
    %115 = vmatprep.subr.mxu0 0.0
    %116 = vmatpush1.msra.mxu0 0.0
    %117 = vmatprep.subr.mxu0 0.0
    %118 = vmatpush1.msra.mxu0 0.0
    %119 = vmatprep.mubr.f32.mxu0 0.0
    %120 = vmatmul.mubr.f32.gmra.mrb[0].mxu0 %v53
    %v121 = vpop.f32.mrb[0].mxu0
    %v122 = vadd.f32 %v49, %v121
    %v123 = vpop.f32.mrb[0].mxu0
    %124 = vdwg.mxu0
    %125 = vst [vmem:[#allocation7] sm:$0xff] %v122
    // Predicated region
    $region22: #{tpu_custom_call.1} parent=1 // pred_check
      _
    $region23: #{tpu_custom_call.1} parent=1 // pred_check_branch
      %127 = sbr.rel (0) target = $region25
    $region24: #{tpu_custom_call.1} parent=1 // pred_region
      %s129 = ssub.s32 128, 128
      %130 = vsyncadd [#allocation4], %s129
      %s132 = sshll.u32 [#allocation7], 4
      %s133 = int_to_ptr.vmem [resolvable:$true] %s132
      %135 = dma.vmem_to_hbm [thread:$0]  %s133, 128, %s3, [#allocation4]
    $region25: #{tpu_custom_call.1} parent=1 // pred_fallthru
      _
    // Predicated region
    $region26: #{tpu_custom_call.1} parent=1 // pred_check
      _
    $region27: #{tpu_custom_call.1} parent=1 // pred_check_branch
      %137 = sbr.rel (0) target = $region29
    $region28: #{tpu_custom_call.1} parent=1 // pred_region
      %138 = dma.done [#allocation4], 128
    $region29: #{tpu_custom_call.1} parent=1 // pred_fallthru
      _
    %139 = vsyncpa [#allocation3], 1
    %140 = vsyncpa [#allocation6], 1
    %141 = vsyncpa [#allocation4], 1

</llo_original>
